<compile_context>
chip_gen: v7x
topology: tpu7x:2x2x1
jax: 0.10.0
libtpu: 0.0.40
codegen_flags: <defaults>
</compile_context>

<pallas_src>
import math

import jax
import jax.numpy as jnp
from jax.experimental import pallas as pl
from jax.experimental.pallas import tpu as pltpu

_LANE = 128                  # lane width (last-dim granularity)
_MAX_TC = 2048               # max columns per tile (8 KiB contiguous rows for f32)
_MIN_TILE_BYTES = 512 << 10  # never shrink a tile below ~512 KiB when splitting for megacore
_VMEM_LIMIT = 48 << 20       # <= v7x's 64 MiB physical VMEM; ample for 4 MiB double-buffered tiles


def make_positional_encoding_table(d_model: int, max_seq_length: int = 5000) -> jnp.ndarray:
    """Deterministic sinusoidal table, identical math to the PyTorch __init__."""
    position = jnp.arange(0, max_seq_length, dtype=jnp.float32)[:, None]            # (L, 1)
    div_term = jnp.exp(jnp.arange(0, d_model, 2, dtype=jnp.float32)
                       * (-math.log(10000.0) / d_model))                             # (D/2,)
    pe_sin = jnp.sin(position * div_term)                                            # (L, D/2)
    pe_cos = jnp.cos(position * div_term)                                            # (L, D/2)
    # interleave: pe[:, 0::2] = sin, pe[:, 1::2] = cos
    pe = jnp.stack([pe_sin, pe_cos], axis=-1).reshape(max_seq_length, d_model)       # (L, D)
    return pe


def _add_pe_kernel(x_ref, pe_ref, o_ref):
    # x_ref: (tb, tc), pe_ref: (1, tc) -- broadcast add on the VPU, lane-dense store.
    o_ref[...] = x_ref[...] + pe_ref[...]


def _tile_bytes_for_device() -> int:
    """Per-generation x-tile byte budget (see design notes)."""
    try:
        kind = jax.devices()[0].device_kind.lower()
    except Exception:
        return 4 << 20
    if "v5 lite" in kind or "v5e" in kind or "v5litepod" in kind:
        return 2 << 20
    return 4 << 20


def _largest_aligned_divisor(cols: int, cap: int) -> int:
    """Largest multiple of 128 that divides `cols` and is <= cap (requires cols % 128 == 0)."""
    t = (min(cap, cols) // _LANE) * _LANE
    while t >= _LANE:
        if cols % t == 0:
            return t
        t -= _LANE
    return _LANE


def positional_encoding_forward(x: jnp.ndarray, pe: jnp.ndarray) -> jnp.ndarray:
    """x: (B, S, D), pe: (max_seq_length, D) with max_seq_length >= S. Returns x + pe[:S]."""
    b, s, d = x.shape
    cols = s * d
    itemsize = jnp.dtype(x.dtype).itemsize
    sub = max(8, 32 // itemsize)  # sublane pack: f32 -> 8, bf16/f16 -> 16, int8/fp8 -> 32

    pe_cast = pe.astype(x.dtype)  # cast once outside the kernel (no-op for f32)
    x2 = x.reshape(b, cols)

    if cols % _LANE == 0:
        cols_p = cols
        # Full flattened table; the index_map only addresses columns [0, S*D), and since
        # tc divides cols no block ever straddles the valid extent.
        pe2 = pe_cast.reshape(1, -1)
    else:
        # Odd shapes: pad the flattened columns to a lane multiple on the host so the
        # kernel stays on the lane-dense unmasked-store path instead of one huge block.
        cols_p = ((cols + _LANE - 1) // _LANE) * _LANE
        pad = cols_p - cols
        x2 = jnp.pad(x2, ((0, 0), (0, pad)))
        pe2 = jnp.pad(pe_cast[:s].reshape(1, cols), ((0, 0), (0, pad)))

    tile_bytes = _tile_bytes_for_device()

    # Column tile: largest 128-multiple divisor of cols_p (no partial column tile).
    tc = _largest_aligned_divisor(cols_p, _MAX_TC)

    # Batch tile: fill the per-tile budget, rounded to the dtype's sublane packing.
    tb = max(1, tile_bytes // (tc * itemsize))
    if tb < b:
        tb = max(sub, (tb // sub) * sub)
    tb = min(tb, b)

    # Megacore: best-effort ensure >= 2 tiles so v7x's second TensorCore gets work,
    # never shrinking a tile below ~512 KiB.
    for _ in range(8):
        if pl.cdiv(b, tb) * pl.cdiv(cols_p, tc) >= 2:
            break
        half_tb = ((tb // 2) // sub) * sub
        if sub <= half_tb < tb and half_tb * tc * itemsize >= _MIN_TILE_BYTES:
            tb = half_tb
            continue
        half_tc = _largest_aligned_divisor(cols_p, max(_LANE, tc // 2))
        if half_tc < tc and tb * half_tc * itemsize >= _MIN_TILE_BYTES:
            tc = half_tc
            continue
        break

    nc = pl.cdiv(cols_p, tc)   # tc divides cols_p -> no partial column tiles
    nb = pl.cdiv(b, tb)

    out2 = pl.pallas_call(
        _add_pe_kernel,
        out_shape=jax.ShapeDtypeStruct((b, cols_p), x.dtype),
        grid_spec=pltpu.PrefetchScalarGridSpec(
            num_scalar_prefetch=0,
            # Column tiles outer, batch inner: the PE block index only changes when the
            # column tile changes, so the PE slab stays resident across batch steps.
            grid=(nc, nb),
            in_specs=[
                pl.BlockSpec((tb, tc), lambda c, bi: (bi, c)),   # x
                pl.BlockSpec((1, tc), lambda c, bi: (0, c)),     # pe (constant over batch axis)
            ],
            out_specs=pl.BlockSpec((tb, tc), lambda c, bi: (bi, c)),
        ),
        # Reuse x's HBM buffer for the output (only a real win if x is donated / dead
        # after the call; otherwise XLA inserts a defensive copy).
        input_output_aliases={0: 0},
        compiler_params=pltpu.CompilerParams(
            dimension_semantics=("parallel", "parallel"),
            vmem_limit_bytes=_VMEM_LIMIT,
        ),
    )(x2, pe2)

    if cols_p != cols:
        out2 = out2[:, :cols]
    return out2.reshape(b, s, d)


if __name__ == "__main__":
    key = jax.random.PRNGKey(0)

    # --- primary case: lane-aligned cols (S*D = 256) ---
    d_model = 32
    max_seq_length = 64   # same formula as max_seq_length=5000, kept small for the demo
    batch, seq = 2, 8

    x = jax.random.normal(key, (batch, seq, d_model), dtype=jnp.float32)
    pe = make_positional_encoding_table(d_model, max_seq_length)

    out = positional_encoding_forward(x, pe)
    out = jax.block_until_ready(out)

    ref = x + pe[:seq][None, :, :]
    assert out.shape == (batch, seq, d_model)
    assert jnp.allclose(out, ref, atol=1e-6), "mismatch vs reference (aligned path)"

    # --- secondary case: non-lane-aligned cols (S*D = 160) exercises the padded path ---
    d_model2 = 20
    x2 = jax.random.normal(jax.random.PRNGKey(1), (batch, seq, d_model2), dtype=jnp.float32)
    pe2 = make_positional_encoding_table(d_model2, max_seq_length)
    out2 = jax.block_until_ready(positional_encoding_forward(x2, pe2))
    ref2 = x2 + pe2[:seq][None, :, :]
    assert jnp.allclose(out2, ref2, atol=1e-6), "mismatch vs reference (padded path)"

    print("KERNEL_OK")
</pallas_src>

<mosaic_0001>
module attributes {stable_mosaic.version = 11 : i64} {
  func.func @_add_pe_kernel(%arg0: i32, %arg1: i32, %arg2: memref<2x256xf32, #tpu.memory_space<vmem>>, %arg3: memref<1x256xf32, #tpu.memory_space<vmem>>, %arg4: memref<2x256xf32, #tpu.memory_space<vmem>>) attributes {dimension_semantics = [#tpu.dimension_semantics<parallel>, #tpu.dimension_semantics<parallel>], iteration_bounds = array<i64: 1, 1>, scalar_prefetch = 0 : i64, scratch_operands = 0 : i64, tpu.core_type = #tpu.core_type<tc>, window_params = [{transform_indices = @transform_0, window_bounds = array<i64: 2, 256>}, {transform_indices = @transform_1, window_bounds = array<i64: 1, 256>}, {transform_indices = @transform_2, window_bounds = array<i64: 2, 256>}]} {
    %c0 = arith.constant 0 : index
    %c0_0 = arith.constant 0 : index
    %0 = vector.load %arg2[%c0, %c0_0] : memref<2x256xf32, #tpu.memory_space<vmem>>, vector<2x256xf32>
    %c0_1 = arith.constant 0 : index
    %c0_2 = arith.constant 0 : index
    %1 = vector.load %arg3[%c0_1, %c0_2] : memref<1x256xf32, #tpu.memory_space<vmem>>, vector<1x256xf32>
    %2 = vector.broadcast %1 : vector<1x256xf32> to vector<2x256xf32>
    %3 = arith.addf %0, %2 : vector<2x256xf32>
    %c0_3 = arith.constant 0 : index
    %c0_4 = arith.constant 0 : index
    %4 = vector.load %arg4[%c0_3, %c0_4] : memref<2x256xf32, #tpu.memory_space<vmem>>, vector<2x256xf32>
    tpu.vector_store %arg4[%c0_3, %c0_4], %3 {strides = array<i32>} : memref<2x256xf32, #tpu.memory_space<vmem>>, vector<2x256xf32>,
    return
  }
  func.func @transform_0(%arg0: i32, %arg1: i32) -> (i32, i32) {
    %c0_i32 = arith.constant 0 : i32
    return %arg1, %arg0 : i32, i32
  }
  func.func @transform_1(%arg0: i32, %arg1: i32) -> (i32, i32) {
    %c0_i32 = arith.constant 0 : i32
    %c0_i32_0 = arith.constant 0 : i32
    return %c0_i32, %arg0 : i32, i32
  }
  func.func @transform_2(%arg0: i32, %arg1: i32) -> (i32, i32) {
    %c0_i32 = arith.constant 0 : i32
    return %arg1, %arg0 : i32, i32
  }
}

</mosaic_0001>

<llo_original>
// kernel: tpu_custom_call.1
$region0: #{tpu_custom_call.1}
  #allocation0 [shape = 'u32[]', space=smem, size = 0x4, offset = 0x4, fixed_abs, tag = 'smem constant byte address 0x4 - core index']
  #allocation1 [shape = 'u32[144,128]{1,0:T(1,128)}', space=vmem, size = 0x12000, scoped, tag = 'internal scratch']
  %s0 = inlined_call_operand.hbm [shape: f32[2,256], index: 0, kind: input, shape index: {}, may-alias: {0,2}]
  %s1 = inlined_call_operand.hbm [shape: f32[1,2048], index: 1, kind: input, shape index: {}]
  %s2 = inlined_call_operand.hbm [shape: f32[2,256], index: 2, kind: output, shape index: {}, may-alias: {0,2}]
  %s3 = sld [smem:[#allocation0]]
  $region26: #{tpu_custom_call.1} parent=0
    _
  %s5 = ssub.s32 1, %s3
  %s6 = scalar_select 0, %s5, %s3
  $region1: #{tpu_custom_call.1} parent=0
    #allocation2 [shape = 'u8[2048]{0}', space=vmem, size = 0x800, scoped, tag = 'input window, operand 0, single buffered']
    #allocation3 [shape = 's32[1]{0}', space=sflag, size = 0x4, scoped, tag = 'scoped memory for tpu_custom_call.1']
    #allocation4 [shape = 's32[1]{0}', space=sflag, size = 0x4, scoped, tag = 'scoped memory for tpu_custom_call.1']
    #allocation5 [shape = 'u8[1024]{0}', space=vmem, size = 0x400, scoped, tag = 'input window, operand 1, single buffered']
    #allocation6 [shape = 's32[1]{0}', space=sflag, size = 0x4, scoped, tag = 'scoped memory for tpu_custom_call.1']
    #allocation7 [shape = 'u8[2048]{0}', space=vmem, size = 0x800, scoped, tag = 'output window, operand 0, single buffered']
    %7 = vsyncpa [#allocation3], 0
    %8 = vsyncpa [#allocation6], 0
    %9 = vsyncpa [#allocation4], 0
    // Predicated region
    $region2: #{tpu_custom_call.1} parent=1 // pred_check
      _
    $region3: #{tpu_custom_call.1} parent=1 // pred_check_branch
      %11 = sbr.rel (0) target = $region5
    $region4: #{tpu_custom_call.1} parent=1 // pred_region
      %s13 = ssub.s32 64, 64
      %14 = vsyncadd [#allocation3], %s13
      %s16 = sshll.u32 [#allocation2], 4
      %s17 = int_to_ptr.vmem [resolvable:$true] %s16
      %19 = dma.hbm_to_vmem [thread:$0]  %s0, 64, %s17, [#allocation3]
    $region5: #{tpu_custom_call.1} parent=1 // pred_fallthru
      _
    // Predicated region
    $region6: #{tpu_custom_call.1} parent=1 // pred_check
      _
    $region7: #{tpu_custom_call.1} parent=1 // pred_check_branch
      %21 = sbr.rel (0) target = $region9
    $region8: #{tpu_custom_call.1} parent=1 // pred_region
      %s23 = ssub.s32 32, 32
      %24 = vsyncadd [#allocation6], %s23
      %s26 = sshll.u32 [#allocation5], 4
      %s27 = int_to_ptr.vmem [resolvable:$true] %s26
      %29 = dma.hbm_to_vmem [thread:$0]  %s1, 32, %s27, [#allocation6]
    $region9: #{tpu_custom_call.1} parent=1 // pred_fallthru
      _
    // Predicated region
    $region10: #{tpu_custom_call.1} parent=1 // pred_check
      _
    $region11: #{tpu_custom_call.1} parent=1 // pred_check_branch
      %31 = sbr.rel (0) target = $region13
    $region12: #{tpu_custom_call.1} parent=1 // pred_region
      %32 = dma.done [#allocation3], 64
    $region13: #{tpu_custom_call.1} parent=1 // pred_fallthru
      _
    // Predicated region
    $region14: #{tpu_custom_call.1} parent=1 // pred_check
      _
    $region15: #{tpu_custom_call.1} parent=1 // pred_check_branch
      %34 = sbr.rel (0) target = $region17
    $region16: #{tpu_custom_call.1} parent=1 // pred_region
      %35 = dma.done [#allocation6], 32
    $region17: #{tpu_custom_call.1} parent=1 // pred_fallthru
      _
    %v36 = vld [vmem:[#allocation2] sm:$0xf]
    %v37 = vld [vmem:[#allocation5] sm:$0x3]
    %v39 = vlaneseq
    %v40 = vshrl.u32 %v39, 7
    %v41 = vsub.s32 0, %v40
    %v42 = vrot.slane %v37, %v41
    %v43 = vlaneseq
    %v44 = vshrl.u32 %v43, 7
    %v45 = vsub.s32 1, %v44
    %v46 = vrot.slane %v37, %v45
    %v47 = vcombine.low %v42, %v46
    %v49 = vunpack.c.l.s4 1983009808
    %v50 = vunpack.c.0.s8 %v49
    %v51 = vlaneseq
    %v52 = vshrl.u32 %v51, 7
    %v53 = vsub.s32 %v50, %v52
    %v54 = vrot.slane %v47, %v53
    %v56 = vadd.f32 %v36, %v54
    %57 = vst [vmem:[#allocation7] sm:$0xf] %v56
    // Predicated region
    $region18: #{tpu_custom_call.1} parent=1 // pred_check
      _
    $region19: #{tpu_custom_call.1} parent=1 // pred_check_branch
      %59 = sbr.rel (0) target = $region21
    $region20: #{tpu_custom_call.1} parent=1 // pred_region
      %s61 = ssub.s32 64, 64
      %62 = vsyncadd [#allocation4], %s61
      %s64 = sshll.u32 [#allocation7], 4
      %s65 = int_to_ptr.vmem [resolvable:$true] %s64
      %67 = dma.vmem_to_hbm [thread:$0]  %s65, 64, %s2, [#allocation4]
    $region21: #{tpu_custom_call.1} parent=1 // pred_fallthru
      _
    // Predicated region
    $region22: #{tpu_custom_call.1} parent=1 // pred_check
      _
    $region23: #{tpu_custom_call.1} parent=1 // pred_check_branch
      %69 = sbr.rel (0) target = $region25
    $region24: #{tpu_custom_call.1} parent=1 // pred_region
      %70 = dma.done [#allocation4], 64
    $region25: #{tpu_custom_call.1} parent=1 // pred_fallthru
      _
    %71 = vsyncpa [#allocation3], 1
    %72 = vsyncpa [#allocation6], 1
    %73 = vsyncpa [#allocation4], 1

</llo_original>
